<compile_context>
chip_gen: v6e
topology: v6e:2x2x1
jax: 0.10.0
libtpu: 0.0.40
codegen_flags: <defaults>
</compile_context>

<pallas_src>
import functools

import jax
import jax.numpy as jnp
from jax.experimental import pallas as pl
from jax.experimental.pallas import tpu as pltpu


# ------------------------------ chip-aware config ---------------------------

def _query_vmem_capacity():
    try:
        info = pltpu.get_tpu_info()
        cap = getattr(info, "vmem_capacity_bytes", None)
        if cap:
            return int(cap)
    except Exception:
        pass
    return 64 * 1024 * 1024  # conservative fallback (v7x per-TC VMEM)


_VMEM_CAP = _query_vmem_capacity()
_VMEM_LIMIT = min((_VMEM_CAP * 3) // 4, 96 * 1024 * 1024)   # <=48 MiB on v7x
# Smaller row tiles on 64 MiB/TC chips (v7x); 256 keeps v5e/v6e near roofline.
_TM_DEFAULT = 128 if _VMEM_CAP <= 64 * 1024 * 1024 else 256

_POS_DIM = 8  # xyz padded to 8 so the (TM*K, 3)@(3, C) pe dot is tile-aligned


# ------------------------------ helpers -------------------------------------

def _round_up(n, m):
    return ((n + m - 1) // m) * m


def _choose_tm(m, target):
    m8 = _round_up(max(m, 8), 8)
    tm = _round_up(min(target, m8), 8)
    # Guarantee >=2 grid steps when the problem allows it: keeps both v7x
    # TensorCores busy and gives the BlockSpec pipeline something to overlap.
    while tm > 8 and pl.cdiv(m8, tm) < 2:
        tm = _round_up(tm // 2, 8)
    return tm


def _pad_rows(x, rows):
    pad = rows - x.shape[0]
    if pad == 0:
        return x
    return jnp.pad(x, [(0, pad)] + [(0, 0)] * (x.ndim - 1))


def _compiler_params():
    return pltpu.CompilerParams(dimension_semantics=("parallel",),
                                vmem_limit_bytes=_VMEM_LIMIT)


# ----------------------------- Pallas kernels -------------------------------

def _linear_kernel(x_ref, w_ref, b_ref, o_ref, *, relu):
    # y = relu?(x @ W + b); bf16 MXU operands, f32 accumulate.
    y = jnp.dot(x_ref[...].astype(jnp.bfloat16), w_ref[...].astype(jnp.bfloat16),
                preferred_element_type=jnp.float32) + b_ref[...]
    if relu:
        y = jnp.maximum(y, 0.0)
    o_ref[...] = y


def _linear_add_kernel(x_ref, w_ref, b_ref, add_ref, o_ref):
    # o = add + relu(x @ W + b)   (UnpoolWithSkip: unpooled feat + proj_skip)
    y = jnp.dot(x_ref[...].astype(jnp.bfloat16), w_ref[...].astype(jnp.bfloat16),
                preferred_element_type=jnp.float32) + b_ref[...]
    o_ref[...] = add_ref[...] + jnp.maximum(y, 0.0)


def _fc1_qkv_kernel(x_ref, w1_ref, b1_ref, wqkv_ref, bqkv_ref, gsum_ref,
                    v_ref, kg_ref, qg_ref):
    # h = act(norm1(fc1(x))); qkv = h @ [Wq|Wk|Wv] + b (BN folded into q/k cols)
    # q/k are only ever consumed through the folded GroupedLinear+BN matrix
    # gsum2, so reduce them to G columns here and never write q/k to HBM.
    C = w1_ref.shape[0]
    h = jnp.dot(x_ref[...].astype(jnp.bfloat16), w1_ref[...].astype(jnp.bfloat16),
                preferred_element_type=jnp.float32) + b1_ref[...]
    h = jnp.maximum(h, 0.0)
    qkv = jnp.dot(h.astype(jnp.bfloat16), wqkv_ref[...].astype(jnp.bfloat16),
                  preferred_element_type=jnp.float32) + bqkv_ref[...]
    # Static column slabs (no iota / where); q,k get the folded BN+ReLU.
    q = jnp.maximum(qkv[:, :C], 0.0)
    k = jnp.maximum(qkv[:, C:2 * C], 0.0)
    v_ref[...] = qkv[:, 2 * C:].astype(v_ref.dtype)          # bf16 stream out
    gs = gsum_ref[...].astype(jnp.bfloat16)
    kg_ref[...] = jnp.dot(k.astype(jnp.bfloat16), gs,
                          preferred_element_type=jnp.float32)
    qg_ref[...] = jnp.dot(q.astype(jnp.bfloat16), gs,
                          preferred_element_type=jnp.float32)


def _gva_block_kernel(qg_ref, kg_ref, val_ref, pos_ref, mask_ref, id_ref,
                      p1w_ref, p1b_ref, p2w_ref, p2b_ref,
                      wew_ref, web_ref, rep_ref,
                      n2s_ref, n2sh_ref, fc3w_ref, fc3b_ref,
                      o_ref):
    TM, K, C = val_ref.shape
    G = wew_ref.shape[0]

    # ---- pe_bias MLP: Linear(3,C)+BN+ReLU then Linear(C, C+G), both MXU ----
    # pos arrives lane-flat (TM*K, 8) so there is no padded (TM,K,3) block and
    # no per-component cross-lane broadcasts.
    h = jnp.dot(pos_ref[...], p1w_ref[...],
                preferred_element_type=jnp.float32) + p1b_ref[...]
    h = jnp.maximum(h, 0.0)                                   # (TM*K, C)
    # Widened RHS [p2w | p2w @ gsum2]: the G tail columns carry peb's folded
    # GroupedLinear+BN contribution to the weight-encoding logits.
    pe = jnp.dot(h.astype(jnp.bfloat16), p2w_ref[...].astype(jnp.bfloat16),
                 preferred_element_type=jnp.float32) + p2b_ref[...]
    peb = pe[:, :C].reshape(TM, K, C)                         # pe bias (value/rel)
    pebg = pe[:, C:].reshape(TM, K, G)                        # pe bias @ gsum2

    # ---- weight encoding: BN(GL(key - q + peb)) folded -> kg - qg + pebg ----
    w = kg_ref[...] - qg_ref[...][:, None, :] + pebg          # (TM, K, G)
    w = jnp.maximum(w, 0.0)                                   # ReLU
    w = jnp.dot(w.reshape(TM * K, G).astype(jnp.bfloat16),
                wew_ref[...].astype(jnp.bfloat16),
                preferred_element_type=jnp.float32) + web_ref[...]
    w = w.reshape(TM, K, G)

    # ---- softmax over neighbours (dim 1), post-softmax mask (as reference) ---
    w = w - jnp.max(w, axis=1, keepdims=True)
    w = jnp.exp(w)
    w = w * pl.reciprocal(jnp.sum(w, axis=1, keepdims=True), approx=False)
    w = w * mask_ref[...][:, :, None]

    # ---- grouped weighted aggregation -----------------------------------
    # TODO(synk): replace this (TM*K,G)@(G,C) MXU expansion with a VPU/XLU
    # group broadcast (reshape val to (TM,K,G,I)) once the relayout is cheap.
    w_exp = jnp.dot(w.reshape(TM * K, G).astype(jnp.bfloat16),
                    rep_ref[...].astype(jnp.bfloat16),
                    preferred_element_type=jnp.float32).reshape(TM, K, C)
    val = val_ref[...].astype(jnp.float32) + peb              # value (+ pe bias)
    attn = jnp.sum(val * w_exp, axis=1)                       # (TM, C)

    # ---- fused block epilogue: act(norm2(.)), fc3(+norm3), residual, act ----
    hh = jnp.maximum(attn * n2s_ref[...] + n2sh_ref[...], 0.0)
    hh = jnp.dot(hh.astype(jnp.bfloat16), fc3w_ref[...].astype(jnp.bfloat16),
                 preferred_element_type=jnp.float32) + fc3b_ref[...]
    o_ref[...] = jnp.maximum(id_ref[...] + hh, 0.0)


# ----------------------------- wrappers --------------------------------------

def linear_op(x, w, b, *, relu, tm=_TM_DEFAULT):
    M, Cin = x.shape
    Cout = w.shape[1]
    TM = _choose_tm(M, tm)
    Mp = _round_up(M, TM)
    xp = _pad_rows(x, Mp)
    out = pl.pallas_call(
        functools.partial(_linear_kernel, relu=relu),
        out_shape=jax.ShapeDtypeStruct((Mp, Cout), jnp.float32),
        grid_spec=pltpu.PrefetchScalarGridSpec(
            num_scalar_prefetch=0,
            grid=(Mp // TM,),
            in_specs=[
                pl.BlockSpec((TM, Cin), lambda i: (i, 0)),
                pl.BlockSpec((Cin, Cout), lambda i: (0, 0)),
                pl.BlockSpec((1, Cout), lambda i: (0, 0)),
            ],
            out_specs=pl.BlockSpec((TM, Cout), lambda i: (i, 0)),
        ),
        compiler_params=_compiler_params(),
    )(xp, w, b.reshape(1, Cout))
    return out[:M]


def linear_add_op(x, w, b, add, *, tm=_TM_DEFAULT):
    M, Cin = x.shape
    Cout = w.shape[1]
    TM = _choose_tm(M, tm)
    Mp = _round_up(M, TM)
    xp = _pad_rows(x, Mp)
    addp = _pad_rows(add, Mp)
    out = pl.pallas_call(
        _linear_add_kernel,
        out_shape=jax.ShapeDtypeStruct((Mp, Cout), jnp.float32),
        grid_spec=pltpu.PrefetchScalarGridSpec(
            num_scalar_prefetch=0,
            grid=(Mp // TM,),
            in_specs=[
                pl.BlockSpec((TM, Cin), lambda i: (i, 0)),
                pl.BlockSpec((Cin, Cout), lambda i: (0, 0)),
                pl.BlockSpec((1, Cout), lambda i: (0, 0)),
                pl.BlockSpec((TM, Cout), lambda i: (i, 0)),
            ],
            out_specs=pl.BlockSpec((TM, Cout), lambda i: (i, 0)),
        ),
        compiler_params=_compiler_params(),
    )(xp, w, b.reshape(1, Cout), addp)
    return out[:M]


def fc1_qkv_op(x, w1, b1, wqkv, bqkv, gsum, *, tm=_TM_DEFAULT):
    M, C = x.shape
    G = gsum.shape[1]
    TM = _choose_tm(M, tm)
    Mp = _round_up(M, TM)
    xp = _pad_rows(x, Mp)
    v, kg, qg = pl.pallas_call(
        _fc1_qkv_kernel,
        out_shape=(jax.ShapeDtypeStruct((Mp, C), jnp.bfloat16),
                   jax.ShapeDtypeStruct((Mp, G), jnp.float32),
                   jax.ShapeDtypeStruct((Mp, G), jnp.float32)),
        grid_spec=pltpu.PrefetchScalarGridSpec(
            num_scalar_prefetch=0,
            grid=(Mp // TM,),
            in_specs=[
                pl.BlockSpec((TM, C), lambda i: (i, 0)),
                pl.BlockSpec((C, C), lambda i: (0, 0)),
                pl.BlockSpec((1, C), lambda i: (0, 0)),
                pl.BlockSpec((C, 3 * C), lambda i: (0, 0)),
                pl.BlockSpec((1, 3 * C), lambda i: (0, 0)),
                pl.BlockSpec((C, G), lambda i: (0, 0)),
            ],
            out_specs=(pl.BlockSpec((TM, C), lambda i: (i, 0)),
                       pl.BlockSpec((TM, G), lambda i: (i, 0)),
                       pl.BlockSpec((TM, G), lambda i: (i, 0))),
        ),
        compiler_params=_compiler_params(),
    )(xp, w1, b1.reshape(1, C), wqkv, bqkv.reshape(1, 3 * C), gsum)
    return v[:M], kg[:M], qg[:M]


def gva_block_op(qg, kg_g, val_g, pos, mask, identity, p, *, tm=_TM_DEFAULT):
    N, C = identity.shape
    K = val_g.shape[1]
    G = qg.shape[1]
    TM = _choose_tm(N, tm)
    Np = _round_up(N, TM)
    CG = C + G

    qg_p = _pad_rows(qg, Np)
    kg_p = _pad_rows(kg_g, Np)
    val_p = _pad_rows(val_g, Np)
    mask_p = _pad_rows(mask, Np)
    id_p = _pad_rows(identity, Np)
    # pos goes in lane-flat as (Np*K, 8): no lane-3 padded (TM,K,3) block.
    pos_p = _pad_rows(pos, Np).reshape(Np * K, 3)
    pos_p = jnp.pad(pos_p, ((0, 0), (0, _POS_DIM - 3)))

    row2 = lambda i: (i, 0)
    row3 = lambda i: (i, 0, 0)
    cst = lambda i: (0, 0)

    # TODO(synk): constant-weight in_specs could use pipeline_mode=pl.Buffered(1)
    # to drop their second VMEM buffer on v7x once validated on-chip.
    out = pl.pallas_call(
        _gva_block_kernel,
        out_shape=jax.ShapeDtypeStruct((Np, C), jnp.float32),
        grid_spec=pltpu.PrefetchScalarGridSpec(
            num_scalar_prefetch=0,
            grid=(Np // TM,),
            in_specs=[
                pl.BlockSpec((TM, G), row2),           # q @ gsum2
                pl.BlockSpec((TM, K, G), row3),        # gathered (k @ gsum2)
                pl.BlockSpec((TM, K, C), row3),        # gathered value (bf16)
                pl.BlockSpec((TM * K, _POS_DIM), row2),  # rel. positions, flat
                pl.BlockSpec((TM, K), row2),           # neighbour mask
                pl.BlockSpec((TM, C), row2),           # residual identity
                pl.BlockSpec((_POS_DIM, C), cst),      # p1_w (Linear(3,C)+BN)
                pl.BlockSpec((1, C), cst),             # p1_b
                pl.BlockSpec((C, CG), cst),            # [p2_w | p2_w @ gsum2]
                pl.BlockSpec((1, CG), cst),            # widened p2 bias (+we_shift)
                pl.BlockSpec((G, G), cst),             # Linear(G,G) weight
                pl.BlockSpec((1, G), cst),             # Linear(G,G) bias
                pl.BlockSpec((G, C), cst),             # group->channel repeat
                pl.BlockSpec((1, C), cst),             # norm2 scale
                pl.BlockSpec((1, C), cst),             # norm2 shift
                pl.BlockSpec((C, C), cst),             # fc3_w (+norm3 folded)
                pl.BlockSpec((1, C), cst),             # fc3_b
            ],
            out_specs=pl.BlockSpec((TM, C), row2),
        ),
        compiler_params=_compiler_params(),
    )(qg_p, kg_p, val_p, pos_p, mask_p, id_p,
      p['p1_w'], p['p1_b'].reshape(1, C),
      p['p2_w_wide'], p['p2_b_wide'].reshape(1, CG),
      p['we_w'], p['we_b'].reshape(1, G), p['rep'],
      p['n2_scale'].reshape(1, C), p['n2_shift'].reshape(1, C),
      p['fc3_w'], p['fc3_b'].reshape(1, C))
    return out[:N]


# ----------------------------- parameter init -------------------------------

def _uniform(key, shape, lo=-0.1, hi=0.1):
    return jax.random.uniform(key, shape, jnp.float32, lo, hi)


def init_bn(key, c, eps=1e-5):
    k1, k2, k3, k4 = jax.random.split(key, 4)
    gamma = jax.random.uniform(k1, (c,), jnp.float32, 0.8, 1.2)
    beta = _uniform(k2, (c,))
    mean = _uniform(k3, (c,))
    var = jax.random.uniform(k4, (c,), jnp.float32, 0.9, 1.1)
    scale = gamma / jnp.sqrt(var + eps)
    shift = beta - mean * scale
    return scale, shift


def init_linear(key, cin, cout, bias=True):
    k1, k2 = jax.random.split(key)
    w = _uniform(k1, (cin, cout))
    b = _uniform(k2, (cout,)) if bias else jnp.zeros((cout,), jnp.float32)
    return w, b


def init_linear_bn(key, cin, cout, bias=True):
    k1, k2 = jax.random.split(key)
    w, b = init_linear(k1, cin, cout, bias)
    scale, shift = init_bn(k2, cout)
    return w * scale[None, :], b * scale + shift


def init_block(key, C, G):
    keys = jax.random.split(key, 12)
    I = C // G
    p = {}
    p['fc1_w'], p['fc1_b'] = init_linear_bn(keys[0], C, C, bias=False)   # fc1 + norm1
    q_w, q_b = init_linear_bn(keys[1], C, C, bias=True)                  # linear_q + BN
    k_w, k_b = init_linear_bn(keys[2], C, C, bias=True)                  # linear_k + BN
    v_w, v_b = init_linear(keys[3], C, C, bias=True)                     # linear_v
    p['qkv_w'] = jnp.concatenate([q_w, k_w, v_w], axis=1)                # fused (C, 3C)
    p['qkv_b'] = jnp.concatenate([q_b, k_b, v_b], axis=0)

    p1_w, p1_b = init_linear_bn(keys[4], 3, C, bias=True)                # linear_p_bias[0:3]
    p['p1_w'] = jnp.pad(p1_w, ((0, _POS_DIM - 3), (0, 0)))               # pad xyz dim to 8
    p['p1_b'] = p1_b
    p2_w, p2_b = init_linear(keys[5], C, C, bias=True)                   # linear_p_bias[3]

    gl_w = _uniform(keys[6], (C,))                                       # GroupedLinear weight
    S = (jnp.arange(C)[:, None] // I == jnp.arange(G)[None, :]).astype(jnp.float32)
    we_scale, we_shift = init_bn(keys[7], G)                             # PointBatchNorm(G)
    # GroupedLinear + BN(G) folded into one (C,G) matrix; shift becomes a bias.
    gsum2 = (gl_w[:, None] * S) * we_scale[None, :]
    p['gsum'] = gsum2
    p['rep'] = S.T                                                       # group -> channel
    # Widen the pe second linear: [p2w | p2w@gsum2]; G-tail bias carries
    # p2b@gsum2 + we_shift so the weight-encoding logits come for free.
    p['p2_w_wide'] = jnp.concatenate([p2_w, p2_w @ gsum2], axis=1)
    p['p2_b_wide'] = jnp.concatenate([p2_b, p2_b @ gsum2 + we_shift], axis=0)

    p['we_w'], p['we_b'] = init_linear(keys[8], G, G, bias=True)         # Linear(G,G)
    p['n2_scale'], p['n2_shift'] = init_bn(keys[9], C)                   # norm2
    p['fc3_w'], p['fc3_b'] = init_linear_bn(keys[10], C, C, bias=False)  # fc3 + norm3
    return p


def init_decoder(key, in_ch, skip_ch, C, G, depth):
    keys = jax.random.split(key, depth + 2)
    p = {}
    p['proj_w'], p['proj_b'] = init_linear_bn(keys[0], in_ch, C, bias=True)
    p['proj_skip_w'], p['proj_skip_b'] = init_linear_bn(keys[1], skip_ch, C, bias=True)
    p['blocks'] = [init_block(keys[2 + i], C, G) for i in range(depth)]
    return p


# ----------------------------- forward (glue) -------------------------------

def knn_query(k, coord, offset):
    # TODO(synk): pointops.knn_query as brute-force O(N^2) top_k in plain JAX
    # (glue); replace with a tiled/bucketed Pallas KNN at production N.
    N = coord.shape[0]
    batch_id = jnp.sum(jnp.arange(N)[:, None] >= offset[None, :], axis=1)
    d2 = jnp.sum((coord[:, None, :] - coord[None, :, :]) ** 2, axis=-1)
    same = batch_id[:, None] == batch_id[None, :]
    d2 = jnp.where(same, d2, jnp.float32(1e30))
    _, idx = jax.lax.top_k(-d2, k)
    return idx.astype(jnp.int32)


def block_forward(p, coord, feat, ref_idx, mask):
    identity = feat
    # Fused fc1+norm1+act -> q/k/v; emits v (bf16) and the pre-reduced kg, qg.
    v, kg, qg = fc1_qkv_op(feat, p['fc1_w'], p['fc1_b'], p['qkv_w'], p['qkv_b'],
                           p['gsum'])
    # TODO(synk): move these gathers into the GVA kernel via scalar-prefetched
    # ref_idx + manual DMA (memory_space=pl.ANY) to avoid the HBM round trip;
    # the big value gather already streams in bf16 and the key gather is gone.
    val_g = v[ref_idx]                               # (N, K, C) bf16
    kg_g = kg[ref_idx]                               # (N, K, G) f32 (tiny)
    pos = coord[ref_idx] - coord[:, None, :]         # (N, K, 3)
    # Fused: pe_bias MLP + grouped vector attention + norm2/act + fc3(+norm3)
    # + residual add + act.
    return gva_block_op(qg, kg_g, val_g, pos, mask, identity, p)


def decoder_forward(params, points, skip_points, cluster, *, neighbours):
    coord, feat, offset = points
    s_coord, s_feat, s_offset = skip_points
    # UnpoolWithSkip (backend='map')
    f = linear_op(feat, params['proj_w'], params['proj_b'], relu=True)
    f = f[cluster]                                   # map unpool (gather glue)
    f = linear_add_op(s_feat, params['proj_skip_w'], params['proj_skip_b'], f)
    coord, feat, offset = s_coord, f, s_offset
    # BlockSequence
    ref_idx = knn_query(neighbours, coord, offset)
    mask = jnp.sign(ref_idx + 1).astype(jnp.float32)
    for bp in params['blocks']:
        feat = block_forward(bp, coord, feat, ref_idx, mask)
    return coord, feat, offset


# --------------------------------- main --------------------------------------

if __name__ == "__main__":
    key = jax.random.PRNGKey(0)
    B = 2
    in_channels, skip_channels = 16, 8
    C, G, K, depth = 32, 4, 8, 2
    nc_per, ns_per = 8, 32
    Nc, Ns = B * nc_per, B * ns_per

    ks = jax.random.split(key, 10)
    coord = jax.random.normal(ks[0], (Nc, 3), jnp.float32)
    feat = jax.random.normal(ks[1], (Nc, in_channels), jnp.float32)
    offset = jnp.array([nc_per, 2 * nc_per], jnp.int32)
    s_coord = jax.random.normal(ks[2], (Ns, 3), jnp.float32)
    s_feat = jax.random.normal(ks[3], (Ns, skip_channels), jnp.float32)
    s_offset = jnp.array([ns_per, 2 * ns_per], jnp.int32)
    cluster = jnp.concatenate([
        jax.random.randint(ks[4], (ns_per,), 0, nc_per),
        jax.random.randint(ks[5], (ns_per,), nc_per, 2 * nc_per),
    ]).astype(jnp.int32)

    params = init_decoder(ks[6], in_channels, skip_channels, C, G, depth)

    out_coord, out_feat, out_offset = decoder_forward(
        params,
        (coord, feat, offset),
        (s_coord, s_feat, s_offset),
        cluster,
        neighbours=K,
    )
    jax.block_until_ready(out_feat)
    assert out_feat.shape == (Ns, C)
    assert bool(jnp.all(jnp.isfinite(out_feat)))
    print("KERNEL_OK")
</pallas_src>

<mosaic_0001>
module attributes {stable_mosaic.version = 11 : i64} {
  func.func @_linear_kernel(%arg0: i32, %arg1: memref<8x16xf32, #tpu.memory_space<vmem>>, %arg2: memref<16x32xf32, #tpu.memory_space<vmem>>, %arg3: memref<1x32xf32, #tpu.memory_space<vmem>>, %arg4: memref<8x32xf32, #tpu.memory_space<vmem>>) attributes {dimension_semantics = [#tpu.dimension_semantics<parallel>], iteration_bounds = array<i64: 2>, scalar_prefetch = 0 : i64, scratch_operands = 0 : i64, tpu.core_type = #tpu.core_type<tc>, window_params = [{transform_indices = @transform_0, window_bounds = array<i64: 8, 16>}, {pipeline_mode = #tpu.pipeline_mode<synchronous>, transform_indices = @transform_1, window_bounds = array<i64: 16, 32>}, {pipeline_mode = #tpu.pipeline_mode<synchronous>, transform_indices = @transform_2, window_bounds = array<i64: 1, 32>}, {transform_indices = @transform_3, window_bounds = array<i64: 8, 32>}]} {
    %c0 = arith.constant 0 : index
    %c0_0 = arith.constant 0 : index
    %0 = vector.load %arg1[%c0, %c0_0] : memref<8x16xf32, #tpu.memory_space<vmem>>, vector<8x16xf32>
    %1 = arith.truncf %0 : vector<8x16xf32> to vector<8x16xbf16>
    %c0_1 = arith.constant 0 : index
    %c0_2 = arith.constant 0 : index
    %2 = vector.load %arg2[%c0_1, %c0_2] : memref<16x32xf32, #tpu.memory_space<vmem>>, vector<16x32xf32>
    %3 = arith.truncf %2 : vector<16x32xf32> to vector<16x32xbf16>
    %cst = arith.constant dense<0.000000e+00> : vector<8x32xf32>
    %4 = tpu.matmul %1, %3, %cst {dimension_numbers = #tpu.dot_dimension_numbers<[1], [0], [0], [1], [0, 0, 1, 1], [], []>} : vector<8x16xbf16>, vector<16x32xbf16>, vector<8x32xf32> -> vector<8x32xf32>
    %c0_3 = arith.constant 0 : index
    %c0_4 = arith.constant 0 : index
    %5 = vector.load %arg3[%c0_3, %c0_4] : memref<1x32xf32, #tpu.memory_space<vmem>>, vector<1x32xf32>
    %6 = vector.broadcast %5 : vector<1x32xf32> to vector<8x32xf32>
    %7 = arith.addf %4, %6 : vector<8x32xf32>
    %cst_5 = arith.constant 0.000000e+00 : f32
    %8 = vector.broadcast %cst_5 : f32 to vector<8x32xf32>
    %9 = arith.maximumf %7, %8 : vector<8x32xf32>
    %c0_6 = arith.constant 0 : index
    %c0_7 = arith.constant 0 : index
    %10 = vector.load %arg4[%c0_6, %c0_7] : memref<8x32xf32, #tpu.memory_space<vmem>>, vector<8x32xf32>
    tpu.vector_store %arg4[%c0_6, %c0_7], %9 {strides = array<i32>} : memref<8x32xf32, #tpu.memory_space<vmem>>, vector<8x32xf32>,
    return
  }
  func.func @transform_0(%arg0: i32) -> (i32, i32) {
    %c0_i32 = arith.constant 0 : i32
    %c0_i32_0 = arith.constant 0 : i32
    return %arg0, %c0_i32 : i32, i32
  }
  func.func @transform_1(%arg0: i32) -> (i32, i32) {
    %c0_i32 = arith.constant 0 : i32
    %c0_i32_0 = arith.constant 0 : i32
    %c0_i32_1 = arith.constant 0 : i32
    return %c0_i32, %c0_i32_0 : i32, i32
  }
  func.func @transform_2(%arg0: i32) -> (i32, i32) {
    %c0_i32 = arith.constant 0 : i32
    %c0_i32_0 = arith.constant 0 : i32
    %c0_i32_1 = arith.constant 0 : i32
    return %c0_i32, %c0_i32_0 : i32, i32
  }
  func.func @transform_3(%arg0: i32) -> (i32, i32) {
    %c0_i32 = arith.constant 0 : i32
    %c0_i32_0 = arith.constant 0 : i32
    return %arg0, %c0_i32 : i32, i32
  }
}

</mosaic_0001>

<llo_original>
// kernel: tpu_custom_call.1
$region0: #{tpu_custom_call.1}
  #allocation0 [shape = 'u32[]', space=smem, size = 0x4, offset = 0x4, fixed_abs, tag = 'smem constant byte address 0x4 - core index']
  #allocation1 [shape = 'u32[144,128]{1,0:T(1,128)}', space=vmem, size = 0x12000, scoped, tag = 'internal scratch']
  %s0 = inlined_call_operand.hbm [shape: f32[16,16], index: 0, kind: input, shape index: {}]
  %s1 = inlined_call_operand.hbm [shape: f32[16,32], index: 1, kind: input, shape index: {}]
  %s2 = inlined_call_operand.vmem [shape: f32[1,32], index: 2, kind: input, shape index: {}]
  %s3 = inlined_call_operand.hbm [shape: f32[16,32], index: 3, kind: output, shape index: {}]
  %s4 = sld [smem:[#allocation0]]
  $region53: #{tpu_custom_call.1} parent=0
    _
  %s6 = ssub.s32 1, %s4
  %s7 = scalar_select 0, %s6, %s4
  $region1: #{tpu_custom_call.1} parent=0
    #allocation2 [shape = 'u8[8192]{0}', space=vmem, size = 0x2000, scoped, tag = 'input window, operand 0']
    #allocation3 [shape = 's32[2]{0}', space=sflag, size = 0x8, scoped, tag = 'scoped memory for tpu_custom_call.1']
    #allocation4 [shape = 's32[2]{0}', space=sflag, size = 0x8, scoped, tag = 'scoped memory for tpu_custom_call.1']
    #allocation5 [shape = 'u8[8192]{0}', space=vmem, size = 0x2000, scoped, tag = 'input window, operand 1, single buffered']
    #allocation6 [shape = 's32[1]{0}', space=sflag, size = 0x4, scoped, tag = 'scoped memory for tpu_custom_call.1']
    #allocation7 [shape = 'u8[8192]{0}', space=vmem, size = 0x2000, scoped, tag = 'output window, operand 0']
    %8 = vsyncpa [#allocation3], 0
    %s9 = scalar_lea.sflag [#allocation3], 1
    %10 = vsyncpa %s9, 0
    %11 = vsyncpa [#allocation6], 0
    %12 = vsyncpa [#allocation4], 0
    %s13 = scalar_lea.sflag [#allocation4], 1
    %14 = vsyncpa %s13, 0
    loop: start=0, step=1, limit=4
    $region2: #{tpu_custom_call.1} parent=1 // loop_pre_header
      _
    $region3: #{tpu_custom_call.1} parent=1 // loop_header
      %s16 = sphi 0, %s20
      %p17 = scmp.ge.s32.totalorder %s16, 4
      %s26 = sphi 0, %s28
      %s29 = sphi 0, %s26
      %s30 = sphi 0, %s29
      %s46 = sphi 0, %s30
      %s50 = sphi 0, %s50
      %s52 = sphi 0, %s50
      %s53 = sphi 0, %s52
      %s67 = sphi 0, %s53
      %s71 = sphi 0, %s71
      %s73 = sphi 0, %s71
      %s74 = sphi 0, %s73
      %s88 = sphi 0, %s74
      %s94 = sphi 0, %s96
      %s97 = sphi 0, %s94
      %s98 = sphi 0, %s97
      %s114 = sphi 0, %s98
    $region4: #{tpu_custom_call.1} parent=1 // loop_header_branch
      %19 = sbr.rel (%p17) target = $region8
    $region5: #{tpu_custom_call.1} parent=1 // loop_body
      %s21 = ssub.s32 %s16, 1
      %s22 = ssub.s32 %s16, 2
      %s23 = sadd.s32 %s16, 1
      %s24 = ssub.s32 %s16, %s23
      %p25 = scmp.eq.s32.totalorder %s24, 0
      %s27 = sadd.s32 %s26, 1
      %s28 = scalar_select %p25, %s26, %s27
      %p31 = pneg %p25
      %p32 = scmp.eq.s32.totalorder %s16, 1
      %p33 = por %p31, %p32
      %p34 = scmp.ne.s32.totalorder %s26, %s29
      %p35 = scmp.eq.s32.totalorder %s16, 0
      %p36 = por %p34, %p35
      %p37 = scmp.ne.s32.totalorder %s26, %s29
      %p38 = scmp.eq.s32.totalorder %s21, 1
      %p39 = por %p37, %p38
      %p40 = scmp.ne.s32.totalorder %s29, %s30
      %p41 = scmp.eq.s32.totalorder %s21, 0
      %p42 = por %p40, %p41
      %p43 = scmp.ne.s32.totalorder %s29, %s30
      %p44 = scmp.eq.s32.totalorder %s22, 1
      %p45 = por %p43, %p44
      %p47 = scmp.ne.s32.totalorder %s30, %s46
      %p48 = scmp.eq.s32.totalorder %s22, 0
      %p49 = por %p47, %p48
      %s51 = sadd.s32 %s50, 1
      %p54 = scmp.eq.s32.totalorder %s16, 1
      %p55 = scmp.ne.s32.totalorder %s50, %s52
      %p56 = scmp.eq.s32.totalorder %s16, 0
      %p57 = por %p55, %p56
      %p58 = scmp.ne.s32.totalorder %s50, %s52
      %p59 = scmp.eq.s32.totalorder %s21, 1
      %p60 = por %p58, %p59
      %p61 = scmp.ne.s32.totalorder %s52, %s53
      %p62 = scmp.eq.s32.totalorder %s21, 0
      %p63 = por %p61, %p62
      %p64 = scmp.ne.s32.totalorder %s52, %s53
      %p65 = scmp.eq.s32.totalorder %s22, 1
      %p66 = por %p64, %p65
      %p68 = scmp.ne.s32.totalorder %s53, %s67
      %p69 = scmp.eq.s32.totalorder %s22, 0
      %p70 = por %p68, %p69
      %s72 = sadd.s32 %s71, 1
      %p75 = scmp.eq.s32.totalorder %s16, 1
      %p76 = scmp.ne.s32.totalorder %s71, %s73
      %p77 = scmp.eq.s32.totalorder %s16, 0
      %p78 = por %p76, %p77
      %p79 = scmp.ne.s32.totalorder %s71, %s73
      %p80 = scmp.eq.s32.totalorder %s21, 1
      %p81 = por %p79, %p80
      %p82 = scmp.ne.s32.totalorder %s73, %s74
      %p83 = scmp.eq.s32.totalorder %s21, 0
      %p84 = por %p82, %p83
      %p85 = scmp.ne.s32.totalorder %s73, %s74
      %p86 = scmp.eq.s32.totalorder %s22, 1
      %p87 = por %p85, %p86
      %p89 = scmp.ne.s32.totalorder %s74, %s88
      %p90 = scmp.eq.s32.totalorder %s22, 0
      %p91 = por %p89, %p90
      %s92 = ssub.s32 %s16, %s23
      %p93 = scmp.eq.s32.totalorder %s92, 0
      %s95 = sadd.s32 %s94, 1
      %s96 = scalar_select %p93, %s94, %s95
      %p99 = pneg %p93
      %p100 = scmp.eq.s32.totalorder %s16, 1
      %p101 = por %p99, %p100
      %p102 = scmp.ne.s32.totalorder %s94, %s97
      %p103 = scmp.eq.s32.totalorder %s16, 0
      %p104 = por %p102, %p103
      %p105 = scmp.ne.s32.totalorder %s94, %s97
      %p106 = scmp.eq.s32.totalorder %s21, 1
      %p107 = por %p105, %p106
      %p108 = scmp.ne.s32.totalorder %s97, %s98
      %p109 = scmp.eq.s32.totalorder %s21, 0
      %p110 = por %p108, %p109
      %p111 = scmp.ne.s32.totalorder %s97, %s98
      %p112 = scmp.eq.s32.totalorder %s22, 1
      %p113 = por %p111, %p112
      %p115 = scmp.ne.s32.totalorder %s98, %s114
      %p116 = scmp.eq.s32.totalorder %s22, 0
      %p117 = por %p115, %p116
      %p118 = scmp.le.s32.totalorder 1, %s16
      %p119 = scmp.lt.s32.totalorder %s16, 3
      %p120 = pnand %p118, %p119
      %p121 = pneg %p120
      // Predicated region
      $region9: #{tpu_custom_call.1} parent=5 // pred_check
        _
      $region10: #{tpu_custom_call.1} parent=5 // pred_check_branch
        %123 = sbr.rel (%p120) target = $region12
      $region11: #{tpu_custom_call.1} parent=5 // pred_region
        %s124 = ssub.s32 %s16, 1
        // Predicated region
        $region13: #{tpu_custom_call.1} parent=11 // pred_check
          %p125 = pneg %p63
        $region14: #{tpu_custom_call.1} parent=11 // pred_check_branch
          %127 = sbr.rel (%p125) target = $region16
        $region15: #{tpu_custom_call.1} parent=11 // pred_region
          %s129 = ssub.s32 256, 256
          %130 = vsyncadd [#allocation6], %s129
          %s131 = sshll.u32 [#allocation5], 4
          %s132 = int_to_ptr.vmem [resolvable:$true] %s131
          %137 = dma.hbm_to_vmem [thread:$0]  %s1, 256, %s132, [#allocation6], 128, 128, 8
        $region16: #{tpu_custom_call.1} parent=11 // pred_fallthru
          _
        // Predicated region
        $region17: #{tpu_custom_call.1} parent=11 // pred_check
          %p138 = pneg %p84
        $region18: #{tpu_custom_call.1} parent=11 // pred_check_branch
          %140 = sbr.rel (%p138) target = $region20
        $region19: #{tpu_custom_call.1} parent=11 // pred_region
          _
        $region20: #{tpu_custom_call.1} parent=11 // pred_fallthru
          _
      $region12: #{tpu_custom_call.1} parent=5 // pred_fallthru
        _
      %p141 = scmp.lt.s32.totalorder %s16, 2
      // Predicated region
      $region21: #{tpu_custom_call.1} parent=5 // pred_check
        %p142 = pneg %p141
      $region22: #{tpu_custom_call.1} parent=5 // pred_check_branch
        %144 = sbr.rel (%p142) target = $region24
      $region23: #{tpu_custom_call.1} parent=5 // pred_region
        // Predicated region
        $region25: #{tpu_custom_call.1} parent=23 // pred_check
          %p145 = pneg %p36
        $region26: #{tpu_custom_call.1} parent=23 // pred_check_branch
          %147 = sbr.rel (%p145) target = $region28
        $region27: #{tpu_custom_call.1} parent=23 // pred_region
          %s148 = sand.u32 %s26, 1
          %s149 = scalar_lea.sflag [#allocation3], %s148
          %s150 = sand.u32 %s26, 1
          %s151 = smul.addr %s150, 8
          %s152 = scalar_lea.vmem [#allocation2], %s151
          %s154 = ssub.s32 128, 128
          %155 = vsyncadd %s149, %s154
          %s156 = smul.addr %s16, 128
          %s157 = scalar_lea.hbm %s0, %s156
          %s159 = sshll.u32 %s152, 4
          %s160 = int_to_ptr.vmem [resolvable:$true] %s159
          %162 = dma.hbm_to_vmem [thread:$0]  %s157, 128, %s160, %s149
        $region28: #{tpu_custom_call.1} parent=23 // pred_fallthru
          _
      $region24: #{tpu_custom_call.1} parent=5 // pred_fallthru
        _
      %p163 = scmp.le.s32.totalorder 1, %s16
      %p164 = scmp.lt.s32.totalorder %s16, 3
      %p165 = pnand %p163, %p164
      %p166 = pneg %p165
      // Predicated region
      $region29: #{tpu_custom_call.1} parent=5 // pred_check
        _
      $region30: #{tpu_custom_call.1} parent=5 // pred_check_branch
        %168 = sbr.rel (%p165) target = $region32
      $region31: #{tpu_custom_call.1} parent=5 // pred_region
        %s169 = ssub.s32 %s16, 1
        %s170 = sand.u32 %s29, 1
        %s171 = scalar_lea.sflag [#allocation3], %s170
        %s172 = sand.u32 %s29, 1
        %s173 = smul.addr %s172, 8
        %s174 = scalar_lea.vmem [#allocation2], %s173
        // Predicated region
        $region33: #{tpu_custom_call.1} parent=31 // pred_check
          %p175 = pneg %p42
        $region34: #{tpu_custom_call.1} parent=31 // pred_check_branch
          %177 = sbr.rel (%p175) target = $region36
        $region35: #{tpu_custom_call.1} parent=31 // pred_region
          %178 = dma.done %s171, 128
        $region36: #{tpu_custom_call.1} parent=31 // pred_fallthru
          _
        // Predicated region
        $region37: #{tpu_custom_call.1} parent=31 // pred_check
          %p179 = pneg %p63
        $region38: #{tpu_custom_call.1} parent=31 // pred_check_branch
          %181 = sbr.rel (%p179) target = $region40
        $region39: #{tpu_custom_call.1} parent=31 // pred_region
          %182 = dma.done [#allocation6], 256
        $region40: #{tpu_custom_call.1} parent=31 // pred_fallthru
          _
        %s183 = sand.u32 %s29, 1
        %s184 = scalar_lea.sflag [#allocation3], %s183
        %s185 = sand.u32 %s29, 1
        %s186 = smul.addr %s185, 8
        %s187 = scalar_lea.vmem [#allocation2], %s186
        %p188 = pneg %p42
        %p189 = pneg %p39
        %p190 = pneg %p63
        %p191 = pneg %p60
        %p192 = pneg %p84
        %p193 = pneg %p81
        %p194 = pneg %p110
        %p195 = pneg %p107
        %s196 = sand.u32 %s97, 1
        %s197 = scalar_lea.sflag [#allocation4], %s196
        %s198 = sand.u32 %s97, 1
        %s199 = smul.addr %s198, 8
        %s200 = scalar_lea.vmem [#allocation7], %s199
        %v202 = vld [vmem:[%s174] sm:$0xff]
        %v203 = vpack.c.bf16 %v202, %v202
        %v204 = vld [vmem:[#allocation5] sm:$0xff]
        %v205 = vld [vmem:[#allocation5 + $0x8] sm:$0xff]
        %v206 = vpack.c.bf16 %v205, %v204
        %v207 = vld [vmem:[%s2] sm:$0x1]
        %v209 = vlaneseq
        %v210 = vshrl.u32 %v209, 7
        %v211 = vsub.s32 0, %v210
        %v212 = vrot.slane %v207, %v211
        %vm214 = vcmask 130048
        %v216 = vsel %vm214, %v203, 0
        %218 = vmatprep.subr.bf16.mxu0 0
        %219 = vmatpush1.bf16.msra.mxu0 0
        %220 = vmatprep.subr.bf16.mxu0 0
        %221 = vmatpush1.bf16.msra.mxu0 0
        %222 = vmatprep.subr.bf16.mxu0 0
        %223 = vmatpush1.bf16.msra.mxu0 0
        %224 = vmatprep.subr.bf16.mxu0 0
        %225 = vmatpush1.bf16.msra.mxu0 0
        %226 = vmatprep.subr.bf16.mxu0 0
        %227 = vmatpush1.bf16.msra.mxu0 0
        %228 = vmatprep.subr.bf16.mxu0 0
        %229 = vmatpush1.bf16.msra.mxu0 0
        %230 = vmatprep.subr.bf16.mxu0 0
        %231 = vmatpush1.bf16.msra.mxu0 0
        %232 = vmatprep.subr.bf16.mxu0 0
        %233 = vmatpush1.bf16.msra.mxu0 %v206
        %234 = vmatprep.subr.bf16.mxu0 0
        %235 = vmatpush2.bf16.msra.mxu0 0
        %236 = vmatprep.subr.bf16.mxu0 0
        %237 = vmatpush2.bf16.msra.mxu0 0
        %238 = vmatprep.subr.bf16.mxu0 0
        %239 = vmatpush2.bf16.msra.mxu0 0
        %240 = vmatprep.subr.bf16.mxu0 0
        %241 = vmatpush2.bf16.msra.mxu0 0
        %242 = vmatprep.subr.bf16.mxu0 0
        %243 = vmatpush2.bf16.msra.mxu0 0
        %244 = vmatprep.subr.bf16.mxu0 0
        %245 = vmatpush2.bf16.msra.mxu0 0
        %246 = vmatprep.subr.bf16.mxu0 0
        %247 = vmatpush2.bf16.msra.mxu0 0
        %248 = vmatprep.subr.bf16.mxu0 0
        %249 = vmatpush2.bf16.msra.mxu0 0
        %250 = vmatprep.mubr.bf16.mxu0 0
        %251 = vmatmul.mubr.bf16.gmra.mxu0 %v216
        %v252 = vpop.f32.mrf.mxu0
        %v253 = vadd.f32 %v212, %v252
        %v254 = vpop.f32.mrf.mxu0
        %v255 = vpop.f32.mrf.mxu0
        %v256 = vpop.f32.mrf.mxu0
        %257 = vdwg.mxu0
        %v258 = vmax.f32 %v253, 0.0
        %vm259 = vcmask 261120
        %260 = vst.msk [vmem:[%s200] sm:$0xff] %vm259, %v258
        %s261 = sand.u32 %s97, 1
        %s262 = scalar_lea.sflag [#allocation4], %s261
        %s263 = sand.u32 %s97, 1
        %s264 = smul.addr %s263, 8
        %s265 = scalar_lea.vmem [#allocation7], %s264
        // Predicated region
        $region41: #{tpu_custom_call.1} parent=31 // pred_check
          %p266 = pneg %p107
        $region42: #{tpu_custom_call.1} parent=31 // pred_check_branch
          %268 = sbr.rel (%p266) target = $region44
        $region43: #{tpu_custom_call.1} parent=31 // pred_region
          %s270 = ssub.s32 128, 128
          %271 = vsyncadd %s262, %s270
          %s272 = smul.addr %s21, 128
          %s273 = scalar_lea.hbm %s3, %s272
          %s275 = sshll.u32 %s265, 4
          %s276 = int_to_ptr.vmem [resolvable:$true] %s275
          %278 = dma.vmem_to_hbm [thread:$0]  %s276, 128, %s273, %s262
        $region44: #{tpu_custom_call.1} parent=31 // pred_fallthru
          _
      $region32: #{tpu_custom_call.1} parent=5 // pred_fallthru
        _
      %p279 = scmp.le.s32.totalorder 2, %s16
      // Predicated region
      $region45: #{tpu_custom_call.1} parent=5 // pred_check
        %p280 = pneg %p279
      $region46: #{tpu_custom_call.1} parent=5 // pred_check_branch
        %282 = sbr.rel (%p280) target = $region48
      $region47: #{tpu_custom_call.1} parent=5 // pred_region
        %s283 = ssub.s32 %s16, 2
        // Predicated region
        $region49: #{tpu_custom_call.1} parent=47 // pred_check
          %p284 = pneg %p113
        $region50: #{tpu_custom_call.1} parent=47 // pred_check_branch
          %286 = sbr.rel (%p284) target = $region52
        $region51: #{tpu_custom_call.1} parent=47 // pred_region
          %s287 = sand.u32 %s98, 1
          %s288 = scalar_lea.sflag [#allocation4], %s287
          %s289 = sand.u32 %s98, 1
          %s290 = smul.addr %s289, 8
          %s291 = scalar_lea.vmem [#allocation7], %s290
          %292 = dma.done %s288, 128
        $region52: #{tpu_custom_call.1} parent=47 // pred_fallthru
          _
      $region48: #{tpu_custom_call.1} parent=5 // pred_fallthru
        _
    $region6: #{tpu_custom_call.1} parent=1 // loop_footer
      %s20 = sadd.s32 1, %s16
    $region7: #{tpu_custom_call.1} parent=1 // loop_footer_branch
      %15 = sbr.rel target = $region3
    $region8: #{tpu_custom_call.1} parent=1 // loop_exit
      _
    %293 = vsyncpa [#allocation3], 1
    %s294 = scalar_lea.sflag [#allocation3], 1
    %295 = vsyncpa %s294, 1
    %296 = vsyncpa [#allocation6], 1
    %297 = vsyncpa [#allocation4], 1
    %s298 = scalar_lea.sflag [#allocation4], 1
    %299 = vsyncpa %s298, 1

</llo_original>
